<compile_context>
chip_gen: v7x
topology: tpu7x:2x2x1
jax: 0.10.0
libtpu: 0.0.40
codegen_flags: <defaults>
</compile_context>

<pallas_src>
import functools
from typing import NamedTuple

import jax
import jax.numpy as jnp
from jax import lax
from jax.experimental import pallas as pl
from jax.experimental.pallas import tpu as pltpu


# ----------------------------------------------------------------------------
# helpers
# ----------------------------------------------------------------------------
def _round_up(x, m):
    return (x + m - 1) // m * m


def _hash_mix(h):
    """Murmur3-style 32-bit finalizer on uint32 values (element-wise only)."""
    h = h ^ (h >> 16)
    h = h * jnp.uint32(0x7FEB352D)
    h = h ^ (h >> 15)
    h = h * jnp.uint32(0x846CA68B)
    h = h ^ (h >> 16)
    return h


_ROW_C = 0x9E3779B9
_COL_C = 0x85EBCA6B


def dropout_reference(x, seed, p=0.5):
    """Plain-JAX reference of the in-kernel counter-based dropout (exact)."""
    b, k = x.shape
    rows = jnp.arange(b, dtype=jnp.uint32).reshape(b, 1)
    cols = jnp.arange(k, dtype=jnp.uint32).reshape(1, k)
    h = jnp.uint32(seed) + rows * jnp.uint32(_ROW_C) + cols * jnp.uint32(_COL_C)
    keep = _hash_mix(h) < jnp.uint32(0x80000000)
    return jnp.where(keep, x, 0.0) * (1.0 / (1.0 - p)), keep


def _pick_tile(dim, cap):
    """Largest multiple of 128 <= cap minimizing padding of round_up(dim,128)."""
    dimp = _round_up(dim, 128)
    best, best_pad = 128, None
    for cand in range(128, min(cap, dimp) + 1, 128):
        padded = _round_up(dimp, cand)
        if best_pad is None or padded < best_pad or (padded == best_pad and cand > best):
            best, best_pad = cand, padded
    return best


def _choose_kn_tiles(inp, nout):
    tk = _pick_tile(inp, 2048)
    hp = _round_up(nout, 128)
    # Keep >= 2 output-column tiles when H allows it, so a "parallel" j axis
    # gives the v7x megacore something to split even when batch is tiny.
    tn_cap = min(1024, hp // 2) if hp >= 256 else hp
    tn = _pick_tile(nout, tn_cap)
    return tk, tn


def _choose_tm(batch):
    # 256 rows fill the v6e/v7x 256-wide MXU, but only when it still leaves
    # >= 2 batch tiles (so the mask cache + i-axis megacore split stay usable).
    if batch >= 512:
        return 256
    return min(128, _round_up(batch, 8))


# ----------------------------------------------------------------------------
# kernel
# ----------------------------------------------------------------------------
def sigdrop_kernel(seed_ref, x_ref, w_ref, b_ref, o_ref, acc_ref, xcache_ref=None,
                   *, tm, tk, training, inv_keep, mxu_dtype):
    """Fused dropout + Linear tile.

    seed_ref   : SMEM (1,) int32        scalar-prefetched PRNG seed
    x_ref      : VMEM (tm, tk)          input tile (f32 in training, MXU dtype in eval)
    w_ref      : VMEM (tk, tn)          kernel-ready W^T tile (MXU dtype)
    b_ref      : VMEM (1, tn) f32       bias tile
    o_ref      : VMEM (tm, tn) f32      output tile (written at last k step)
    acc_ref    : VMEM (tm, tn) f32      accumulator scratch
    xcache_ref : VMEM (Kk, tm, tk)      masked/cast x cache (optional)
    """
    i = pl.program_id(0)
    j = pl.program_id(1)
    k = pl.program_id(2)

    @pl.when(k == 0)
    def _():
        acc_ref[...] = jnp.zeros_like(acc_ref)

    def masked_x():
        x = x_ref[...]
        if training:
            # Counter-based Bernoulli(0.5): hash(seed, global_row, global_col).
            # Tile offsets + seed are folded into a scalar-unit base; the mask
            # depends only on (i, k) -> identical for every output tile j.
            seed = seed_ref[0].astype(jnp.uint32)
            base = (seed
                    + (i * tm).astype(jnp.uint32) * jnp.uint32(_ROW_C)
                    + (k * tk).astype(jnp.uint32) * jnp.uint32(_COL_C))
            rows = lax.broadcasted_iota(jnp.int32, x.shape, 0).astype(jnp.uint32)
            cols = lax.broadcasted_iota(jnp.int32, x.shape, 1).astype(jnp.uint32)
            h = rows * jnp.uint32(_ROW_C) + cols * jnp.uint32(_COL_C) + base
            keep = _hash_mix(h) < jnp.uint32(0x80000000)
            # Select in f32 (v5e has no bf16 VALU); the 1/(1-p) rescale is an
            # f32 epilogue on the accumulator, not folded into the bf16 weight.
            x = jnp.where(keep, x, jnp.zeros_like(x))
        return x.astype(mxu_dtype)

    if xcache_ref is None:
        x = masked_x()
    else:
        # Mask + cast once per (i, k); reuse for every output-column tile j>0.
        # (Safe because the j axis is marked "arbitrary" when the cache is on.)
        @pl.when(j == 0)
        def _():
            xcache_ref[k] = masked_x()
        x = xcache_ref[k]

    acc_ref[...] += jnp.dot(x, w_ref[...], preferred_element_type=jnp.float32)

    @pl.when(k == pl.num_programs(2) - 1)
    def _():
        acc = acc_ref[...]
        if inv_keep != 1.0:
            acc = acc * inv_keep          # inverted-dropout rescale (f32, exact)
        o_ref[...] = (acc + b_ref[...]).astype(o_ref.dtype)


# ----------------------------------------------------------------------------
# host-side wrapper
# ----------------------------------------------------------------------------
class SigDropParams(NamedTuple):
    w_pad: jax.Array   # (Kp, Hp) kernel-ready weight (transposed, padded, MXU dtype)
    b_pad: jax.Array   # (1, Hp) f32 bias
    inp: int
    nout: int
    p: float
    tk: int
    tn: int


def sigdrop_init(weight, bias, *, p=0.5, mxu_dtype=jnp.bfloat16):
    """One-time weight prep (transpose + pad + MXU-dtype cast)."""
    nout, inp = weight.shape
    tk, tn = _choose_kn_tiles(inp, nout)
    kp, hp = _round_up(inp, tk), _round_up(nout, tn)
    w_pad = jnp.pad(jnp.asarray(weight, jnp.float32).T,
                    ((0, kp - inp), (0, hp - nout))).astype(mxu_dtype)
    b_pad = jnp.pad(jnp.asarray(bias, jnp.float32), (0, hp - nout)).reshape(1, hp)
    return SigDropParams(w_pad, b_pad, int(inp), int(nout), float(p), int(tk), int(tn))


def sigdrop_forward(params: SigDropParams, x, seed, *, training=True):
    """SigDrop forward: y = Linear(Dropout_p(x)).   x: (B, inp) float."""
    B, inp = x.shape
    assert inp == params.inp
    tk, tn = params.tk, params.tn
    Kp, Hp = params.w_pad.shape
    mxu_dtype = params.w_pad.dtype

    tm = _choose_tm(B)
    Bp = _round_up(B, tm)

    if training:
        xp = jnp.asarray(x, jnp.float32)   # keep f32: mask select in f32 (v5e-safe)
    else:
        xp = jnp.asarray(x, mxu_dtype)     # eval: pre-cast halves the x DMA stream
    if (Bp, Kp) != (B, inp):
        xp = jnp.pad(xp, ((0, Bp - B), (0, Kp - inp)))
    seed_arr = jnp.asarray([seed], dtype=jnp.int32)

    gi, gj, gk = Bp // tm, Hp // tn, Kp // tk
    w_bytes = params.w_pad.dtype.itemsize
    x_bytes = xp.dtype.itemsize
    cache_bytes = gk * tm * tk * w_bytes

    # Cache the masked/cast x tile per (i, k) and reuse it across j.  The fill
    # is gated on j == 0, which is only safe if megacore never splits the j
    # axis, so the cache forces j -> "arbitrary"; enable it only when the i
    # axis can feed both v7x TensorCores instead (gi >= 2).  For a single
    # batch tile, keep j "parallel" and recompute the (small-tm) mask.
    use_cache = training and gj > 1 and gi >= 2 and cache_bytes <= (8 << 20)

    scratch = [pltpu.VMEM((tm, tn), jnp.float32)]
    if use_cache:
        scratch.append(pltpu.VMEM((gk, tm, tk), mxu_dtype))

    vmem_est = (2 * (tm * tk * x_bytes + tk * tn * w_bytes + tn * 4)
                + 2 * tm * tn * 4 + tm * tn * 4
                + (cache_bytes if use_cache else 0))
    vmem_limit = int(min(48 << 20, max(32 << 20, vmem_est + (6 << 20))))

    inv_keep = float(1.0 / (1.0 - params.p)) if training else 1.0
    kernel = functools.partial(sigdrop_kernel, tm=tm, tk=tk, training=training,
                               inv_keep=inv_keep, mxu_dtype=mxu_dtype)

    out = pl.pallas_call(
        kernel,
        out_shape=jax.ShapeDtypeStruct((Bp, Hp), jnp.float32),
        grid_spec=pltpu.PrefetchScalarGridSpec(
            num_scalar_prefetch=1,
            grid=(gi, gj, gk),
            in_specs=[
                pl.BlockSpec((tm, tk), lambda i, j, k, seed: (i, k)),   # x
                pl.BlockSpec((tk, tn), lambda i, j, k, seed: (k, j)),   # W^T (prepped)
                pl.BlockSpec((1, tn), lambda i, j, k, seed: (0, j)),    # bias
            ],
            out_specs=pl.BlockSpec((tm, tn), lambda i, j, k, seed: (i, j)),
            scratch_shapes=scratch,
        ),
        compiler_params=pltpu.CompilerParams(
            dimension_semantics=("parallel",
                                 "arbitrary" if use_cache else "parallel",
                                 "arbitrary"),
            vmem_limit_bytes=vmem_limit),
        cost_estimate=pl.CostEstimate(
            flops=2 * Bp * Kp * Hp,
            bytes_accessed=(Bp * Kp * x_bytes * gj     # x re-streamed per j tile
                            + Kp * Hp * w_bytes * gi   # w re-streamed per i tile
                            + Bp * Hp * 4              # output
                            + Hp * 4 * gi),            # bias
            transcendentals=0),
    )(seed_arr, xp, params.w_pad, params.b_pad)

    return out[:B, :params.nout]


# ----------------------------------------------------------------------------
# tests
# ----------------------------------------------------------------------------
if __name__ == "__main__":
    # Small shapes consistent with the module: Linear(inp, nhidden_caps).
    B, INP, NHIDDEN_CAPS = 8, 32, 32

    key = jax.random.PRNGKey(0)
    kx, kw, kb, kp, kx2, kw2, kb2 = jax.random.split(key, 7)

    x = jax.random.normal(kx, (B, INP), dtype=jnp.float32)
    bound = 1.0 / float(INP) ** 0.5
    weight = jax.random.uniform(kw, (NHIDDEN_CAPS, INP), jnp.float32, -bound, bound)
    bias = jax.random.uniform(kb, (NHIDDEN_CAPS,), jnp.float32, -bound, bound)

    # TODO(synk): prior_probs and the `prob` forward argument are dead state in
    # the reference module (nn.Dropout ignores them); not consumed here.
    prior_probs = jax.random.uniform(kp, (NHIDDEN_CAPS, 1), jnp.float32)

    seed = 1234

    # --- f32 MXU path: tight checks against plain-JAX references ------------
    params_f32 = sigdrop_init(weight, bias, p=0.5, mxu_dtype=jnp.float32)

    out_eval = sigdrop_forward(params_f32, x, seed=0, training=False)
    jax.block_until_ready(out_eval)
    ref_eval = jnp.dot(x, weight.T, precision=jax.lax.Precision.HIGHEST) + bias
    assert out_eval.shape == (B, NHIDDEN_CAPS)
    assert jnp.allclose(out_eval, ref_eval, atol=1e-4, rtol=1e-4)

    out_train = sigdrop_forward(params_f32, x, seed=seed, training=True)
    jax.block_until_ready(out_train)
    x_drop, keep = dropout_reference(x, seed, p=0.5)
    ref_train = jnp.dot(x_drop, weight.T, precision=jax.lax.Precision.HIGHEST) + bias
    assert jnp.allclose(out_train, ref_train, atol=1e-4, rtol=1e-4)
    keep_rate = float(jnp.mean(keep.astype(jnp.float32)))
    assert 0.3 < keep_rate < 0.7              # Bernoulli(0.5) sanity check

    # --- default bf16 MXU path at the same small shape -----------------------
    params_bf16 = sigdrop_init(weight, bias, p=0.5)
    out_bf16 = sigdrop_forward(params_bf16, x, seed=seed, training=True)
    jax.block_until_ready(out_bf16)
    ref_bf16 = jnp.dot(x_drop.astype(jnp.bfloat16).astype(jnp.float32),
                       weight.T.astype(jnp.bfloat16).astype(jnp.float32),
                       precision=jax.lax.Precision.HIGHEST) + bias
    assert jnp.allclose(out_bf16, ref_bf16, atol=1e-2, rtol=1e-2)

    # --- larger shape exercising the (i,k) mask cache + multi-tile grid ------
    B2, INP2, H2 = 512, 384, 256
    x2 = jax.random.normal(kx2, (B2, INP2), dtype=jnp.float32)
    bound2 = 1.0 / float(INP2) ** 0.5
    w2 = jax.random.uniform(kw2, (H2, INP2), jnp.float32, -bound2, bound2)
    b2 = jax.random.uniform(kb2, (H2,), jnp.float32, -bound2, bound2)

    params2 = sigdrop_init(w2, b2, p=0.5)                      # bf16 MXU path
    out2 = sigdrop_forward(params2, x2, seed=7, training=True)
    jax.block_until_ready(out2)
    xd2, _ = dropout_reference(x2, 7, p=0.5)
    ref2 = jnp.dot(xd2.astype(jnp.bfloat16).astype(jnp.float32),
                   w2.T.astype(jnp.bfloat16).astype(jnp.float32),
                   precision=jax.lax.Precision.HIGHEST) + b2
    assert out2.shape == (B2, H2)
    assert jnp.allclose(out2, ref2, atol=2e-2, rtol=2e-2)

    out2_eval = sigdrop_forward(params2, x2, seed=0, training=False)
    jax.block_until_ready(out2_eval)
    assert bool(jnp.all(jnp.isfinite(out2_eval)))

    print("KERNEL_OK")
</pallas_src>

<mosaic_0001>
module attributes {stable_mosaic.version = 11 : i64} {
  func.func @sigdrop_kernel(%arg0: i32, %arg1: i32, %arg2: i32, %arg3: memref<1xi32, #tpu.memory_space<smem>>, %arg4: memref<8x128xf32, #tpu.memory_space<vmem>>, %arg5: memref<128x128xf32, #tpu.memory_space<vmem>>, %arg6: memref<1x128xf32, #tpu.memory_space<vmem>>, %arg7: memref<8x128xf32, #tpu.memory_space<vmem>>, %arg8: memref<8x128xf32, #tpu.memory_space<vmem>>) attributes {dimension_semantics = [#tpu.dimension_semantics<parallel>, #tpu.dimension_semantics<parallel>, #tpu.dimension_semantics<arbitrary>], iteration_bounds = array<i64: 1, 1, 1>, scalar_prefetch = 1 : i64, scratch_operands = 1 : i64, tpu.core_type = #tpu.core_type<tc>, window_params = [{transform_indices = @transform_0, window_bounds = array<i64: 8, 128>}, {transform_indices = @transform_1, window_bounds = array<i64: 128, 128>}, {transform_indices = @transform_2, window_bounds = array<i64: 1, 128>}, {transform_indices = @transform_3, window_bounds = array<i64: 8, 128>}]} {
    %c0_i32 = arith.constant 0 : i32
    %0 = arith.cmpi eq, %arg2, %c0_i32 : i32
    %1 = arith.extui %0 : i1 to i32
    %c0_i32_0 = arith.constant 0 : i32
    %2 = arith.cmpi ne, %1, %c0_i32_0 : i32
    scf.if %2 {
      %cst_10 = arith.constant 0.000000e+00 : f32
      %12 = vector.broadcast %cst_10 : f32 to vector<8x128xf32>
      %c0_11 = arith.constant 0 : index
      %c0_12 = arith.constant 0 : index
      %13 = vector.load %arg8[%c0_11, %c0_12] : memref<8x128xf32, #tpu.memory_space<vmem>>, vector<8x128xf32>
      tpu.vector_store %arg8[%c0_11, %c0_12], %12 {strides = array<i32>} : memref<8x128xf32, #tpu.memory_space<vmem>>, vector<8x128xf32>,
    } else {
    }
    %c0 = arith.constant 0 : index
    %c0_1 = arith.constant 0 : index
    %3 = vector.load %arg4[%c0, %c0_1] : memref<8x128xf32, #tpu.memory_space<vmem>>, vector<8x128xf32>
    %c0_2 = arith.constant 0 : index
    %c0_3 = arith.constant 0 : index
    %4 = vector.load %arg8[%c0_2, %c0_3] : memref<8x128xf32, #tpu.memory_space<vmem>>, vector<8x128xf32>
    %c0_4 = arith.constant 0 : index
    %c0_5 = arith.constant 0 : index
    %5 = vector.load %arg5[%c0_4, %c0_5] : memref<128x128xf32, #tpu.memory_space<vmem>>, vector<128x128xf32>
    %cst = arith.constant dense<0.000000e+00> : vector<8x128xf32>
    %6 = tpu.matmul %3, %5, %cst {dimension_numbers = #tpu.dot_dimension_numbers<[1], [0], [0], [1], [0, 0, 1, 1], [], []>} : vector<8x128xf32>, vector<128x128xf32>, vector<8x128xf32> -> vector<8x128xf32>
    %7 = arith.addf %4, %6 : vector<8x128xf32>
    %c0_6 = arith.constant 0 : index
    %c0_7 = arith.constant 0 : index
    %8 = vector.load %arg8[%c0_6, %c0_7] : memref<8x128xf32, #tpu.memory_space<vmem>>, vector<8x128xf32>
    tpu.vector_store %arg8[%c0_6, %c0_7], %7 {strides = array<i32>} : memref<8x128xf32, #tpu.memory_space<vmem>>, vector<8x128xf32>,
    %c0_i32_8 = arith.constant 0 : i32
    %9 = arith.cmpi eq, %arg2, %c0_i32_8 : i32
    %10 = arith.extui %9 : i1 to i32
    %c0_i32_9 = arith.constant 0 : i32
    %11 = arith.cmpi ne, %10, %c0_i32_9 : i32
    scf.if %11 {
      %c0_10 = arith.constant 0 : index
      %c0_11 = arith.constant 0 : index
      %12 = vector.load %arg8[%c0_10, %c0_11] : memref<8x128xf32, #tpu.memory_space<vmem>>, vector<8x128xf32>
      %c0_12 = arith.constant 0 : index
      %c0_13 = arith.constant 0 : index
      %13 = vector.load %arg6[%c0_12, %c0_13] : memref<1x128xf32, #tpu.memory_space<vmem>>, vector<1x128xf32>
      %14 = vector.broadcast %13 : vector<1x128xf32> to vector<8x128xf32>
      %15 = arith.addf %12, %14 : vector<8x128xf32>
      %c0_14 = arith.constant 0 : index
      %c0_15 = arith.constant 0 : index
      %16 = vector.load %arg7[%c0_14, %c0_15] : memref<8x128xf32, #tpu.memory_space<vmem>>, vector<8x128xf32>
      tpu.vector_store %arg7[%c0_14, %c0_15], %15 {strides = array<i32>} : memref<8x128xf32, #tpu.memory_space<vmem>>, vector<8x128xf32>,
    } else {
    }
    return
  }
  func.func @transform_0(%arg0: i32, %arg1: i32, %arg2: i32, %arg3: memref<1xi32, #tpu.memory_space<smem>>) -> (i32, i32) {
    %c0_i32 = arith.constant 0 : i32
    return %arg0, %arg2 : i32, i32
  }
  func.func @transform_1(%arg0: i32, %arg1: i32, %arg2: i32, %arg3: memref<1xi32, #tpu.memory_space<smem>>) -> (i32, i32) {
    %c0_i32 = arith.constant 0 : i32
    return %arg2, %arg1 : i32, i32
  }
  func.func @transform_2(%arg0: i32, %arg1: i32, %arg2: i32, %arg3: memref<1xi32, #tpu.memory_space<smem>>) -> (i32, i32) {
    %c0_i32 = arith.constant 0 : i32
    %c0_i32_0 = arith.constant 0 : i32
    return %c0_i32, %arg1 : i32, i32
  }
  func.func @transform_3(%arg0: i32, %arg1: i32, %arg2: i32, %arg3: memref<1xi32, #tpu.memory_space<smem>>) -> (i32, i32) {
    %c0_i32 = arith.constant 0 : i32
    return %arg0, %arg1 : i32, i32
  }
}

</mosaic_0001>

<llo_original>
// kernel: tpu_custom_call.1
$region0: #{tpu_custom_call.1}
  #allocation0 [shape = 'u32[]', space=smem, size = 0x4, offset = 0x4, fixed_abs, tag = 'smem constant byte address 0x4 - core index']
  #allocation1 [shape = 'u32[144,128]{1,0:T(1,128)}', space=vmem, size = 0x12000, scoped, tag = 'internal scratch']
  #allocation2 [shape = 'f32[8,128]{1,0:T(8,128)}', space=vmem, size = 0x1000, scoped, tag = 'scratch operand']
  #allocation3 [shape = 's32[1]{0}', space=sflag, size = 0x4, scoped, tag = 'scoped memory for tpu_custom_call.1']
  #allocation4 [shape = 's32[1]{0:T(128)S(6)}', space=smem, size = 0x200, scoped, tag = 'prefetched SMEM operand 0']
  %s0 = inlined_call_operand.<no memory space> [shape: s32[1], index: 0, kind: input, shape index: {}]
  %s1 = inlined_call_operand.hbm [shape: f32[8,128], index: 1, kind: input, shape index: {}]
  %s2 = inlined_call_operand.hbm [shape: f32[128,128], index: 2, kind: input, shape index: {}]
  %s3 = inlined_call_operand.vmem [shape: f32[1,128], index: 3, kind: input, shape index: {}]
  %s4 = inlined_call_operand.hbm [shape: f32[8,128], index: 4, kind: output, shape index: {}]
  %s5 = sld [smem:[#allocation0]]
  $region38: #{tpu_custom_call.1} parent=0
    _
  %s7 = ssub.s32 1, %s5
  %s8 = scalar_select 0, %s7, %s5
  %9 = sst [smem:[#allocation4]] %s0
  $region1: #{tpu_custom_call.1} parent=0
    #allocation5 [shape = 'u8[4096]{0}', space=vmem, size = 0x1000, scoped, tag = 'input window, operand 1, single buffered']
    #allocation6 [shape = 's32[1]{0}', space=sflag, size = 0x4, scoped, tag = 'scoped memory for tpu_custom_call.1']
    #allocation7 [shape = 's32[1]{0}', space=sflag, size = 0x4, scoped, tag = 'scoped memory for tpu_custom_call.1']
    #allocation8 [shape = 'u8[65536]{0}', space=vmem, size = 0x10000, scoped, tag = 'input window, operand 2, single buffered']
    #allocation9 [shape = 's32[1]{0}', space=sflag, size = 0x4, scoped, tag = 'scoped memory for tpu_custom_call.1']
    #allocation10 [shape = 'u8[4096]{0}', space=vmem, size = 0x1000, scoped, tag = 'output window, operand 0, single buffered']
    %10 = vsyncpa [#allocation6], 0
    %11 = vsyncpa [#allocation9], 0
    %12 = vsyncpa [#allocation7], 0
    // Predicated region
    $region2: #{tpu_custom_call.1} parent=1 // pred_check
      _
    $region3: #{tpu_custom_call.1} parent=1 // pred_check_branch
      %14 = sbr.rel (0) target = $region5
    $region4: #{tpu_custom_call.1} parent=1 // pred_region
      %s16 = ssub.s32 128, 128
      %17 = vsyncadd [#allocation6], %s16
      %s19 = sshll.u32 [#allocation5], 4
      %s20 = int_to_ptr.vmem [resolvable:$true] %s19
      %22 = dma.hbm_to_vmem [thread:$0]  %s1, 128, %s20, [#allocation6]
    $region5: #{tpu_custom_call.1} parent=1 // pred_fallthru
      _
    // Predicated region
    $region6: #{tpu_custom_call.1} parent=1 // pred_check
      _
    $region7: #{tpu_custom_call.1} parent=1 // pred_check_branch
      %24 = sbr.rel (0) target = $region9
    $region8: #{tpu_custom_call.1} parent=1 // pred_region
      %s26 = ssub.s32 2048, 2048
      %27 = vsyncadd [#allocation9], %s26
      %s28 = sshll.u32 [#allocation8], 4
      %s29 = int_to_ptr.vmem [resolvable:$true] %s28
      %34 = dma.hbm_to_vmem [thread:$0]  %s2, 2048, %s29, [#allocation9], 128, 128, 8
    $region9: #{tpu_custom_call.1} parent=1 // pred_fallthru
      _
    // Predicated region
    $region10: #{tpu_custom_call.1} parent=1 // pred_check
      _
    $region11: #{tpu_custom_call.1} parent=1 // pred_check_branch
      %36 = sbr.rel (0) target = $region13
    $region12: #{tpu_custom_call.1} parent=1 // pred_region
      _
    $region13: #{tpu_custom_call.1} parent=1 // pred_fallthru
      _
    // Predicated region
    $region14: #{tpu_custom_call.1} parent=1 // pred_check
      _
    $region15: #{tpu_custom_call.1} parent=1 // pred_check_branch
      %38 = sbr.rel (0) target = $region17
    $region16: #{tpu_custom_call.1} parent=1 // pred_region
      %39 = dma.done [#allocation6], 128
    $region17: #{tpu_custom_call.1} parent=1 // pred_fallthru
      _
    // Predicated region
    $region18: #{tpu_custom_call.1} parent=1 // pred_check
      _
    $region19: #{tpu_custom_call.1} parent=1 // pred_check_branch
      %41 = sbr.rel (0) target = $region21
    $region20: #{tpu_custom_call.1} parent=1 // pred_region
      %42 = dma.done [#allocation9], 2048
    $region21: #{tpu_custom_call.1} parent=1 // pred_fallthru
      _
    %p43 = scmp.eq.s32.totalorder 0, 0
    // Predicated region
    $region22: #{tpu_custom_call.1} parent=1 // pred_check
      %p44 = pneg %p43
    $region23: #{tpu_custom_call.1} parent=1 // pred_check_branch
      %46 = sbr.rel (%p44) target = $region25
    $region24: #{tpu_custom_call.1} parent=1 // pred_region
      %47 = vst [vmem:[#allocation2] sm:$0xff] 0.0
    $region25: #{tpu_custom_call.1} parent=1 // pred_fallthru
      _
    %v48 = vld [vmem:[#allocation5] sm:$0xff]
    %v49 = vld [vmem:[#allocation2] sm:$0xff]
    %v50 = vld [vmem:[#allocation8] sm:$0xff]
    %v51 = vld [vmem:[#allocation8 + $0x8] sm:$0xff]
    %v52 = vld [vmem:[#allocation8 + $0x10] sm:$0xff]
    %v53 = vld [vmem:[#allocation8 + $0x18] sm:$0xff]
    %v54 = vld [vmem:[#allocation8 + $0x20] sm:$0xff]
    %v55 = vld [vmem:[#allocation8 + $0x28] sm:$0xff]
    %v56 = vld [vmem:[#allocation8 + $0x30] sm:$0xff]
    %v57 = vld [vmem:[#allocation8 + $0x38] sm:$0xff]
    %v58 = vld [vmem:[#allocation8 + $0x40] sm:$0xff]
    %v59 = vld [vmem:[#allocation8 + $0x48] sm:$0xff]
    %v60 = vld [vmem:[#allocation8 + $0x50] sm:$0xff]
    %v61 = vld [vmem:[#allocation8 + $0x58] sm:$0xff]
    %v62 = vld [vmem:[#allocation8 + $0x60] sm:$0xff]
    %v63 = vld [vmem:[#allocation8 + $0x68] sm:$0xff]
    %v64 = vld [vmem:[#allocation8 + $0x70] sm:$0xff]
    %v65 = vld [vmem:[#allocation8 + $0x78] sm:$0xff]
    %66 = vmatprep.subr.mxu0 0.0
    %67 = vmatpush1.msra.mxu0 %v50
    %68 = vmatprep.subr.mxu0 0.0
    %69 = vmatpush1.msra.mxu0 %v51
    %70 = vmatprep.subr.mxu0 0.0
    %71 = vmatpush1.msra.mxu0 %v52
    %72 = vmatprep.subr.mxu0 0.0
    %73 = vmatpush1.msra.mxu0 %v53
    %74 = vmatprep.subr.mxu0 0.0
    %75 = vmatpush1.msra.mxu0 %v54
    %76 = vmatprep.subr.mxu0 0.0
    %77 = vmatpush1.msra.mxu0 %v55
    %78 = vmatprep.subr.mxu0 0.0
    %79 = vmatpush1.msra.mxu0 %v56
    %80 = vmatprep.subr.mxu0 0.0
    %81 = vmatpush1.msra.mxu0 %v57
    %82 = vmatprep.subr.mxu0 0.0
    %83 = vmatpush1.msra.mxu0 %v58
    %84 = vmatprep.subr.mxu0 0.0
    %85 = vmatpush1.msra.mxu0 %v59
    %86 = vmatprep.subr.mxu0 0.0
    %87 = vmatpush1.msra.mxu0 %v60
    %88 = vmatprep.subr.mxu0 0.0
    %89 = vmatpush1.msra.mxu0 %v61
    %90 = vmatprep.subr.mxu0 0.0
    %91 = vmatpush1.msra.mxu0 %v62
    %92 = vmatprep.subr.mxu0 0.0
    %93 = vmatpush1.msra.mxu0 %v63
    %94 = vmatprep.subr.mxu0 0.0
    %95 = vmatpush1.msra.mxu0 %v64
    %96 = vmatprep.subr.mxu0 0.0
    %97 = vmatpush1.msra.mxu0 %v65
    %98 = vmatprep.subr.mxu0 0.0
    %99 = vmatpush1.msra.mxu0 0.0
    %100 = vmatprep.subr.mxu0 0.0
    %101 = vmatpush1.msra.mxu0 0.0
    %102 = vmatprep.subr.mxu0 0.0
    %103 = vmatpush1.msra.mxu0 0.0
    %104 = vmatprep.subr.mxu0 0.0
    %105 = vmatpush1.msra.mxu0 0.0
    %106 = vmatprep.subr.mxu0 0.0
    %107 = vmatpush1.msra.mxu0 0.0
    %108 = vmatprep.subr.mxu0 0.0
    %109 = vmatpush1.msra.mxu0 0.0
    %110 = vmatprep.subr.mxu0 0.0
    %111 = vmatpush1.msra.mxu0 0.0
    %112 = vmatprep.subr.mxu0 0.0
    %113 = vmatpush1.msra.mxu0 0.0
    %114 = vmatprep.subr.mxu0 0.0
    %115 = vmatpush1.msra.mxu0 0.0
    %116 = vmatprep.subr.mxu0 0.0
    %117 = vmatpush1.msra.mxu0 0.0
    %118 = vmatprep.subr.mxu0 0.0
    %119 = vmatpush1.msra.mxu0 0.0
    %120 = vmatprep.subr.mxu0 0.0
    %121 = vmatpush1.msra.mxu0 0.0
    %122 = vmatprep.subr.mxu0 0.0
    %123 = vmatpush1.msra.mxu0 0.0
    %124 = vmatprep.subr.mxu0 0.0
    %125 = vmatpush1.msra.mxu0 0.0
    %126 = vmatprep.subr.mxu0 0.0
    %127 = vmatpush1.msra.mxu0 0.0
    %128 = vmatprep.subr.mxu0 0.0
    %129 = vmatpush1.msra.mxu0 0.0
    %130 = vmatprep.mubr.f32.mxu0 0.0
    %131 = vmatmul.mubr.f32.gmra.mrb[0].mxu0 %v48
    %v132 = vpop.f32.mrb[0].mxu0
    %v133 = vadd.f32 0.0, %v132
    %v134 = vpop.f32.mrb[0].mxu0
    %135 = vdwg.mxu0
    %v136 = vadd.f32 %v49, %v133
    %137 = vst [vmem:[#allocation2] sm:$0xff] %v136
    // Predicated region
    $region26: #{tpu_custom_call.1} parent=1 // pred_check
      %p138 = pneg %p43
    $region27: #{tpu_custom_call.1} parent=1 // pred_check_branch
      %140 = sbr.rel (%p138) target = $region29
    $region28: #{tpu_custom_call.1} parent=1 // pred_region
      %v141 = vld [vmem:[#allocation2] sm:$0xff]
      %v142 = vld [vmem:[%s3] sm:$0x1]
      %v144 = vlaneseq
      %v145 = vshrl.u32 %v144, 7
      %v146 = vsub.s32 0, %v145
      %v147 = vrot.slane %v142, %v146
      %v149 = vadd.f32 %v141, %v147
      %150 = vst [vmem:[#allocation10] sm:$0xff] %v149
    $region29: #{tpu_custom_call.1} parent=1 // pred_fallthru
      _
    // Predicated region
    $region30: #{tpu_custom_call.1} parent=1 // pred_check
      _
    $region31: #{tpu_custom_call.1} parent=1 // pred_check_branch
      %152 = sbr.rel (0) target = $region33
    $region32: #{tpu_custom_call.1} parent=1 // pred_region
      %s154 = ssub.s32 128, 128
      %155 = vsyncadd [#allocation7], %s154
      %s157 = sshll.u32 [#allocation10], 4
      %s158 = int_to_ptr.vmem [resolvable:$true] %s157
      %160 = dma.vmem_to_hbm [thread:$0]  %s158, 128, %s4, [#allocation7]
    $region33: #{tpu_custom_call.1} parent=1 // pred_fallthru
      _
    // Predicated region
    $region34: #{tpu_custom_call.1} parent=1 // pred_check
      _
    $region35: #{tpu_custom_call.1} parent=1 // pred_check_branch
      %162 = sbr.rel (0) target = $region37
    $region36: #{tpu_custom_call.1} parent=1 // pred_region
      %163 = dma.done [#allocation7], 128
    $region37: #{tpu_custom_call.1} parent=1 // pred_fallthru
      _
    %164 = vsyncpa [#allocation6], 1
    %165 = vsyncpa [#allocation9], 1
    %166 = vsyncpa [#allocation7], 1

</llo_original>
